<compile_context>
chip_gen: v6e
topology: v6e:2x2x1
jax: 0.10.0
libtpu: 0.0.40
codegen_flags: <defaults>
</compile_context>

<pallas_src>
import numpy as np
import jax
import jax.numpy as jnp
from jax.experimental import pallas as pl
from jax.experimental.pallas import tpu as pltpu

IM_SIZE = (5, 5)
IN_FEATURES = IM_SIZE[0] * IM_SIZE[1]   # 25
N_NEURONS = 10
ENC_OUT = 2 * N_NEURONS                 # 20  (mu || logvar)

# Tiling / dispatch knobs.
TB_MAX = 4096                 # rows per grid step (multiple of 8). ~20 MiB scoped
                              # VMEM (5 streams x 2 bufs x TB x 128 lanes x 4 B),
                              # safe on v5e/v6e (128 MiB) and v7x (64 MiB).
VMEM_LIMIT_BYTES = 40 * 1024 * 1024
MEGACORE_MIN_ROWS = 2048      # only force >=2 grid steps (v7x megacore) if each
                              # step still gets at least this many rows.
PALLAS_MIN_BATCH = 1024       # below this, plain XLA is faster (launch overhead).


def _round_up(n, m):
    return ((n + m - 1) // m) * m


def _cdiv(a, b):
    return (a + b - 1) // b


# ----------------------------------------------------------------------------
# Kernel
# ----------------------------------------------------------------------------
def _vae_kernel(x_ref, wenc_ref, benc_ref, wdec_ref, bdec_ref, eps_ref,
                xrec_ref, mu_ref, logvar_ref):
    x = x_ref[...]                                                    # (TB, 25)

    # Fused encode: one MXU matmul producing [mu | logvar].
    y_enc = jnp.dot(x, wenc_ref[...],
                    preferred_element_type=jnp.float32) + benc_ref[...]   # (TB, 20)
    mu = y_enc[:, :N_NEURONS]                                         # (TB, 10)
    logvar = y_enc[:, N_NEURONS:]                                     # (TB, 10)

    # Reparametrize: z = mu + eps * exp(0.5 * logvar).
    z = mu + eps_ref[...] * jnp.exp(0.5 * logvar)                     # (TB, 10)

    # Decode.
    xrec_ref[...] = jnp.dot(z, wdec_ref[...],
                            preferred_element_type=jnp.float32) + bdec_ref[...]
    # Separate, lane-0-based, fully-contiguous output stores.
    mu_ref[...] = mu
    logvar_ref[...] = logvar


# ----------------------------------------------------------------------------
# Wrapper
# ----------------------------------------------------------------------------
def _forward_jnp(x2d, pp, eps2d):
    """Plain-JAX reference / small-batch fallback."""
    y_enc = x2d @ pp["w_enc"] + pp["b_enc"]
    mu = y_enc[:, :N_NEURONS]
    logvar = y_enc[:, N_NEURONS:]
    z = mu + eps2d * jnp.exp(0.5 * logvar)
    x_rec = z @ pp["w_dec"] + pp["b_dec"]
    return x_rec, mu, logvar


def minimal_forward(x, packed_params, eps_noise, *, use_pallas=None):
    """x: (B, 5, 5) or (B, 25) float32; eps_noise: (B, 10) float32.

    packed_params: output of pack_params() (fused encoder weight/bias).
    Returns (x_rec, mu, logvar, None, log_var_final), matching the PyTorch
    module's forward (with eps supplied externally instead of torch.randn_like).
    """
    x2d = x.reshape(-1, IN_FEATURES).astype(jnp.float32)
    eps2d = eps_noise.reshape(-1, N_NEURONS).astype(jnp.float32)
    B = x2d.shape[0]
    log_var_final = packed_params["log_var_final"]

    if use_pallas is None:
        use_pallas = B >= PALLAS_MIN_BATCH
    if not use_pallas:
        x_rec, mu, logvar = _forward_jnp(x2d, packed_params, eps2d)
        return x_rec, mu, logvar, None, log_var_final

    # Pad only to a multiple of 8 (sublane alignment); at most 7 extra rows.
    B_pad = _round_up(B, 8)
    if B_pad != B:
        pad = B_pad - B
        x2d = jnp.pad(x2d, ((0, pad), (0, 0)))
        eps2d = jnp.pad(eps2d, ((0, pad), (0, 0)))

    # Batch tile: as large as the VMEM budget allows; partial last block is
    # handled by the cdiv grid (padded rows are discarded on writeback).
    TB = min(TB_MAX, B_pad)
    num_steps = _cdiv(B_pad, TB)
    # Keep >= 2 grid steps for megacore (v7x) when the batch is big enough.
    if num_steps < 2 and B_pad >= 2 * MEGACORE_MIN_ROWS:
        TB = _round_up(_cdiv(B_pad, 2), 8)
        num_steps = _cdiv(B_pad, TB)

    w_enc = packed_params["w_enc"]   # (25, 20)
    b_enc = packed_params["b_enc"]   # (1, 20)
    w_dec = packed_params["w_dec"]   # (10, 25)
    b_dec = packed_params["b_dec"]   # (1, 25)

    flops = B_pad * (2 * IN_FEATURES * ENC_OUT + 2 * N_NEURONS * IN_FEATURES
                     + 3 * N_NEURONS)
    bytes_accessed = (
        B_pad * (IN_FEATURES + N_NEURONS) * 4                 # x, eps in
        + B_pad * (IN_FEATURES + 2 * N_NEURONS) * 4           # x_rec, mu, logvar out
        + (IN_FEATURES * ENC_OUT + ENC_OUT
           + N_NEURONS * IN_FEATURES + IN_FEATURES) * 4)      # params

    out_shapes = (
        jax.ShapeDtypeStruct((B_pad, IN_FEATURES), jnp.float32),
        jax.ShapeDtypeStruct((B_pad, N_NEURONS), jnp.float32),
        jax.ShapeDtypeStruct((B_pad, N_NEURONS), jnp.float32),
    )

    x_rec, mu, logvar = pl.pallas_call(
        _vae_kernel,
        out_shape=out_shapes,
        grid=(num_steps,),
        in_specs=[
            # batch-streamed inputs
            pl.BlockSpec((TB, IN_FEATURES), lambda i: (i, 0)),
            # weights/biases: constant block index -> VMEM-resident across steps
            pl.BlockSpec((IN_FEATURES, ENC_OUT), lambda i: (0, 0)),
            pl.BlockSpec((1, ENC_OUT), lambda i: (0, 0)),
            pl.BlockSpec((N_NEURONS, IN_FEATURES), lambda i: (0, 0)),
            pl.BlockSpec((1, IN_FEATURES), lambda i: (0, 0)),
            pl.BlockSpec((TB, N_NEURONS), lambda i: (i, 0)),
        ],
        out_specs=(
            pl.BlockSpec((TB, IN_FEATURES), lambda i: (i, 0)),
            pl.BlockSpec((TB, N_NEURONS), lambda i: (i, 0)),
            pl.BlockSpec((TB, N_NEURONS), lambda i: (i, 0)),
        ),
        compiler_params=pltpu.CompilerParams(
            dimension_semantics=("parallel",),        # megacore split on v7x
            vmem_limit_bytes=VMEM_LIMIT_BYTES,
        ),
        cost_estimate=pl.CostEstimate(
            flops=flops,
            transcendentals=B_pad * N_NEURONS,
            bytes_accessed=bytes_accessed),
    )(x2d, w_enc, b_enc, w_dec, b_dec, eps2d)

    if B_pad != B:
        x_rec = x_rec[:B]
        mu = mu[:B]
        logvar = logvar[:B]

    return x_rec, mu, logvar, None, log_var_final


# ----------------------------------------------------------------------------
# Parameter init (matches the PyTorch module's init_weights) + one-time packing
# ----------------------------------------------------------------------------
def _xavier_uniform(key, fan_in, fan_out, gain=1.0):
    bound = gain * np.sqrt(6.0 / (fan_in + fan_out))
    # weight stored as (in, out) == transpose of PyTorch's (out, in)
    return jax.random.uniform(key, (fan_in, fan_out), jnp.float32,
                              minval=-bound, maxval=bound)


def init_params(key, n_neurons=N_NEURONS):
    k_mu, k_dec = jax.random.split(key, 2)
    relu_gain = np.sqrt(2.0)
    # fc_enc_1_mu: xavier with gain = relu_gain / in / out (init_weights_layer_linear)
    w_mu = _xavier_uniform(k_mu, IN_FEATURES, n_neurons,
                           gain=relu_gain / IN_FEATURES / n_neurons)
    b_mu = jnp.zeros((1, n_neurons), jnp.float32)
    # fc_enc_1_std: weight zeroed, bias = -1 (overridden after apply)
    w_std = jnp.zeros((IN_FEATURES, n_neurons), jnp.float32)
    b_std = jnp.full((1, n_neurons), -1.0, jnp.float32)
    # fc_dec_1: xavier with gain = relu_gain / in / out
    w_dec = _xavier_uniform(k_dec, n_neurons, IN_FEATURES,
                            gain=relu_gain / n_neurons / IN_FEATURES)
    b_dec = jnp.zeros((1, IN_FEATURES), jnp.float32)
    log_var_final = jnp.float32(0.0)
    return dict(w_mu=w_mu, b_mu=b_mu, w_std=w_std, b_std=b_std,
                w_dec=w_dec, b_dec=b_dec, log_var_final=log_var_final)


def pack_params(params):
    """Fuse encoder weights/biases ONCE (not per forward call)."""
    return dict(
        w_enc=jnp.concatenate([params["w_mu"], params["w_std"]], axis=1),  # (25,20)
        b_enc=jnp.concatenate([params["b_mu"], params["b_std"]], axis=1),  # (1,20)
        w_dec=params["w_dec"],                                             # (10,25)
        b_dec=params["b_dec"],                                             # (1,25)
        log_var_final=params["log_var_final"],
    )


# ----------------------------------------------------------------------------
# Self-test
# ----------------------------------------------------------------------------
if __name__ == "__main__":
    key = jax.random.PRNGKey(0)
    k_params, k_x, k_eps, k_std = jax.random.split(key, 4)

    params = init_params(k_params)
    pp = pack_params(params)

    def _reference(x, eps_noise, raw):
        x2d = x.reshape(-1, IN_FEATURES)
        mu_ref = x2d @ raw["w_mu"] + raw["b_mu"]
        lv_ref = x2d @ raw["w_std"] + raw["b_std"]
        z_ref = mu_ref + eps_noise * jnp.exp(0.5 * lv_ref)
        xr_ref = z_ref @ raw["w_dec"] + raw["b_dec"]
        return xr_ref, mu_ref, lv_ref

    # --- small batch (forces the Pallas path despite the small-B fallback) ---
    B = 2
    x = jax.random.normal(k_x, (B, IM_SIZE[0], IM_SIZE[1]), jnp.float32)
    eps_noise = jax.random.normal(k_eps, (B, N_NEURONS), jnp.float32)
    x_rec, mu, logvar, _none, log_var_final = minimal_forward(
        x, pp, eps_noise, use_pallas=True)
    jax.block_until_ready((x_rec, mu, logvar, log_var_final))

    xr_ref, mu_ref, lv_ref = _reference(x, eps_noise, params)
    assert np.allclose(np.asarray(mu), np.asarray(mu_ref), atol=1e-5)
    assert np.allclose(np.asarray(logvar), np.asarray(lv_ref), atol=1e-5)
    assert np.allclose(np.asarray(x_rec), np.asarray(xr_ref), atol=1e-5)

    # --- batch not a multiple of 8, and a non-trivial W_std (exercises the
    #     logvar matmul path beyond the zero-init) ---
    params2 = dict(params)
    params2["w_std"] = 0.05 * jax.random.normal(
        k_std, (IN_FEATURES, N_NEURONS), jnp.float32)
    pp2 = pack_params(params2)

    B2 = 37
    x_big = jax.random.normal(k_x, (B2, IM_SIZE[0], IM_SIZE[1]), jnp.float32)
    eps_big = jax.random.normal(k_eps, (B2, N_NEURONS), jnp.float32)
    xr2, mu2, lv2, _n, _lvf = minimal_forward(x_big, pp2, eps_big, use_pallas=True)
    jax.block_until_ready((xr2, mu2, lv2))

    xr_ref2, mu_ref2, lv_ref2 = _reference(x_big, eps_big, params2)
    assert np.allclose(np.asarray(mu2), np.asarray(mu_ref2), atol=1e-5)
    assert np.allclose(np.asarray(lv2), np.asarray(lv_ref2), atol=1e-5)
    assert np.allclose(np.asarray(xr2), np.asarray(xr_ref2), atol=1e-5)

    print("KERNEL_OK")
</pallas_src>

<mosaic_0001>
module attributes {stable_mosaic.version = 11 : i64} {
  func.func @_vae_kernel(%arg0: i32, %arg1: memref<8x25xf32, #tpu.memory_space<vmem>>, %arg2: memref<25x20xf32, #tpu.memory_space<vmem>>, %arg3: memref<1x20xf32, #tpu.memory_space<vmem>>, %arg4: memref<10x25xf32, #tpu.memory_space<vmem>>, %arg5: memref<1x25xf32, #tpu.memory_space<vmem>>, %arg6: memref<8x10xf32, #tpu.memory_space<vmem>>, %arg7: memref<8x25xf32, #tpu.memory_space<vmem>>, %arg8: memref<8x10xf32, #tpu.memory_space<vmem>>, %arg9: memref<8x10xf32, #tpu.memory_space<vmem>>) attributes {dimension_semantics = [#tpu.dimension_semantics<parallel>], iteration_bounds = array<i64: 1>, scalar_prefetch = 0 : i64, scratch_operands = 0 : i64, tpu.core_type = #tpu.core_type<tc>, window_params = [{transform_indices = @transform_0, window_bounds = array<i64: 8, 25>}, {pipeline_mode = #tpu.pipeline_mode<synchronous>, transform_indices = @transform_1, window_bounds = array<i64: 25, 20>}, {pipeline_mode = #tpu.pipeline_mode<synchronous>, transform_indices = @transform_2, window_bounds = array<i64: 1, 20>}, {pipeline_mode = #tpu.pipeline_mode<synchronous>, transform_indices = @transform_3, window_bounds = array<i64: 10, 25>}, {pipeline_mode = #tpu.pipeline_mode<synchronous>, transform_indices = @transform_4, window_bounds = array<i64: 1, 25>}, {transform_indices = @transform_5, window_bounds = array<i64: 8, 10>}, {transform_indices = @transform_6, window_bounds = array<i64: 8, 25>}, {transform_indices = @transform_7, window_bounds = array<i64: 8, 10>}, {transform_indices = @transform_8, window_bounds = array<i64: 8, 10>}]} {
    %c0 = arith.constant 0 : index
    %c0_0 = arith.constant 0 : index
    %0 = vector.load %arg1[%c0, %c0_0] : memref<8x25xf32, #tpu.memory_space<vmem>>, vector<8x25xf32>
    %c0_1 = arith.constant 0 : index
    %c0_2 = arith.constant 0 : index
    %1 = vector.load %arg2[%c0_1, %c0_2] : memref<25x20xf32, #tpu.memory_space<vmem>>, vector<25x20xf32>
    %cst = arith.constant dense<0.000000e+00> : vector<8x20xf32>
    %2 = tpu.matmul %0, %1, %cst {dimension_numbers = #tpu.dot_dimension_numbers<[1], [0], [0], [1], [0, 0, 1, 1], [], []>} : vector<8x25xf32>, vector<25x20xf32>, vector<8x20xf32> -> vector<8x20xf32>
    %c0_3 = arith.constant 0 : index
    %c0_4 = arith.constant 0 : index
    %3 = vector.load %arg3[%c0_3, %c0_4] : memref<1x20xf32, #tpu.memory_space<vmem>>, vector<1x20xf32>
    %4 = vector.broadcast %3 : vector<1x20xf32> to vector<8x20xf32>
    %5 = arith.addf %2, %4 : vector<8x20xf32>
    %6 = vector.extract_strided_slice %5 {offsets = [0, 0], sizes = [8, 10], strides = [1, 1]} : vector<8x20xf32> to vector<8x10xf32>
    %7 = vector.extract_strided_slice %5 {offsets = [0, 10], sizes = [8, 10], strides = [1, 1]} : vector<8x20xf32> to vector<8x10xf32>
    %c0_5 = arith.constant 0 : index
    %c0_6 = arith.constant 0 : index
    %8 = vector.load %arg6[%c0_5, %c0_6] : memref<8x10xf32, #tpu.memory_space<vmem>>, vector<8x10xf32>
    %cst_7 = arith.constant 5.000000e-01 : f32
    %9 = vector.broadcast %cst_7 : f32 to vector<8x10xf32>
    %10 = arith.mulf %9, %7 : vector<8x10xf32>
    %11 = math.exp %10 : vector<8x10xf32>
    %12 = arith.mulf %8, %11 : vector<8x10xf32>
    %13 = arith.addf %6, %12 : vector<8x10xf32>
    %c0_8 = arith.constant 0 : index
    %c0_9 = arith.constant 0 : index
    %14 = vector.load %arg4[%c0_8, %c0_9] : memref<10x25xf32, #tpu.memory_space<vmem>>, vector<10x25xf32>
    %cst_10 = arith.constant dense<0.000000e+00> : vector<8x25xf32>
    %15 = tpu.matmul %13, %14, %cst_10 {dimension_numbers = #tpu.dot_dimension_numbers<[1], [0], [0], [1], [0, 0, 1, 1], [], []>} : vector<8x10xf32>, vector<10x25xf32>, vector<8x25xf32> -> vector<8x25xf32>
    %c0_11 = arith.constant 0 : index
    %c0_12 = arith.constant 0 : index
    %16 = vector.load %arg5[%c0_11, %c0_12] : memref<1x25xf32, #tpu.memory_space<vmem>>, vector<1x25xf32>
    %17 = vector.broadcast %16 : vector<1x25xf32> to vector<8x25xf32>
    %18 = arith.addf %15, %17 : vector<8x25xf32>
    %c0_13 = arith.constant 0 : index
    %c0_14 = arith.constant 0 : index
    %19 = vector.load %arg7[%c0_13, %c0_14] : memref<8x25xf32, #tpu.memory_space<vmem>>, vector<8x25xf32>
    tpu.vector_store %arg7[%c0_13, %c0_14], %18 {strides = array<i32>} : memref<8x25xf32, #tpu.memory_space<vmem>>, vector<8x25xf32>,
    %c0_15 = arith.constant 0 : index
    %c0_16 = arith.constant 0 : index
    %20 = vector.load %arg8[%c0_15, %c0_16] : memref<8x10xf32, #tpu.memory_space<vmem>>, vector<8x10xf32>
    tpu.vector_store %arg8[%c0_15, %c0_16], %6 {strides = array<i32>} : memref<8x10xf32, #tpu.memory_space<vmem>>, vector<8x10xf32>,
    %c0_17 = arith.constant 0 : index
    %c0_18 = arith.constant 0 : index
    %21 = vector.load %arg9[%c0_17, %c0_18] : memref<8x10xf32, #tpu.memory_space<vmem>>, vector<8x10xf32>
    tpu.vector_store %arg9[%c0_17, %c0_18], %7 {strides = array<i32>} : memref<8x10xf32, #tpu.memory_space<vmem>>, vector<8x10xf32>,
    return
  }
  func.func @transform_0(%arg0: i32) -> (i32, i32) {
    %c0_i32 = arith.constant 0 : i32
    %c0_i32_0 = arith.constant 0 : i32
    return %arg0, %c0_i32 : i32, i32
  }
  func.func @transform_1(%arg0: i32) -> (i32, i32) {
    %c0_i32 = arith.constant 0 : i32
    %c0_i32_0 = arith.constant 0 : i32
    %c0_i32_1 = arith.constant 0 : i32
    return %c0_i32, %c0_i32_0 : i32, i32
  }
  func.func @transform_2(%arg0: i32) -> (i32, i32) {
    %c0_i32 = arith.constant 0 : i32
    %c0_i32_0 = arith.constant 0 : i32
    %c0_i32_1 = arith.constant 0 : i32
    return %c0_i32, %c0_i32_0 : i32, i32
  }
  func.func @transform_3(%arg0: i32) -> (i32, i32) {
    %c0_i32 = arith.constant 0 : i32
    %c0_i32_0 = arith.constant 0 : i32
    %c0_i32_1 = arith.constant 0 : i32
    return %c0_i32, %c0_i32_0 : i32, i32
  }
  func.func @transform_4(%arg0: i32) -> (i32, i32) {
    %c0_i32 = arith.constant 0 : i32
    %c0_i32_0 = arith.constant 0 : i32
    %c0_i32_1 = arith.constant 0 : i32
    return %c0_i32, %c0_i32_0 : i32, i32
  }
  func.func @transform_5(%arg0: i32) -> (i32, i32) {
    %c0_i32 = arith.constant 0 : i32
    %c0_i32_0 = arith.constant 0 : i32
    return %arg0, %c0_i32 : i32, i32
  }
  func.func @transform_6(%arg0: i32) -> (i32, i32) {
    %c0_i32 = arith.constant 0 : i32
    %c0_i32_0 = arith.constant 0 : i32
    return %arg0, %c0_i32 : i32, i32
  }
  func.func @transform_7(%arg0: i32) -> (i32, i32) {
    %c0_i32 = arith.constant 0 : i32
    %c0_i32_0 = arith.constant 0 : i32
    return %arg0, %c0_i32 : i32, i32
  }
  func.func @transform_8(%arg0: i32) -> (i32, i32) {
    %c0_i32 = arith.constant 0 : i32
    %c0_i32_0 = arith.constant 0 : i32
    return %arg0, %c0_i32 : i32, i32
  }
}

</mosaic_0001>

<llo_original>
// kernel: tpu_custom_call.1
$region0: #{tpu_custom_call.1}
  #allocation0 [shape = 'u32[]', space=smem, size = 0x4, offset = 0x4, fixed_abs, tag = 'smem constant byte address 0x4 - core index']
  #allocation1 [shape = 'u32[144,128]{1,0:T(1,128)}', space=vmem, size = 0x12000, scoped, tag = 'internal scratch']
  %s0 = inlined_call_operand.vmem [shape: f32[8,25], index: 0, kind: input, shape index: {}]
  %s1 = inlined_call_operand.vmem [shape: f32[25,20], index: 1, kind: input, shape index: {}]
  %s2 = inlined_call_operand.vmem [shape: f32[1,20], index: 2, kind: input, shape index: {}]
  %s3 = inlined_call_operand.vmem [shape: f32[10,25], index: 3, kind: input, shape index: {}]
  %s4 = inlined_call_operand.vmem [shape: f32[1,25], index: 4, kind: input, shape index: {}]
  %s5 = inlined_call_operand.vmem [shape: f32[8,10], index: 5, kind: input, shape index: {}]
  %s6 = inlined_call_operand.hbm [shape: f32[8,25], index: 6, kind: output, shape index: {0}]
  %s7 = inlined_call_operand.hbm [shape: f32[8,10], index: 7, kind: output, shape index: {1}]
  %s8 = inlined_call_operand.hbm [shape: f32[8,10], index: 8, kind: output, shape index: {2}]
  %9 = xla_tuple %s6, %s7, %s8
  %s10 = sld [smem:[#allocation0]]
  $region50: #{tpu_custom_call.1} parent=0
    _
  %s12 = ssub.s32 1, %s10
  %s13 = scalar_select 0, %s12, %s10
  $region1: #{tpu_custom_call.1} parent=0
    #allocation2 [shape = 'u8[4096]{0}', space=vmem, size = 0x1000, scoped, tag = 'output window, operand 0, single buffered']
    #allocation3 [shape = 's32[1]{0}', space=sflag, size = 0x4, scoped, tag = 'scoped memory for tpu_custom_call.1']
    #allocation4 [shape = 'u8[4096]{0}', space=vmem, size = 0x1000, scoped, tag = 'output window, operand 1, single buffered']
    #allocation5 [shape = 's32[1]{0}', space=sflag, size = 0x4, scoped, tag = 'scoped memory for tpu_custom_call.1']
    #allocation6 [shape = 'u8[4096]{0}', space=vmem, size = 0x1000, scoped, tag = 'output window, operand 2, single buffered']
    %14 = vsyncpa [#allocation3], 0
    %15 = vsyncpa [#allocation5], 0
    // Predicated region
    $region2: #{tpu_custom_call.1} parent=1 // pred_check
      _
    $region3: #{tpu_custom_call.1} parent=1 // pred_check_branch
      %17 = sbr.rel (0) target = $region5
    $region4: #{tpu_custom_call.1} parent=1 // pred_region
      _
    $region5: #{tpu_custom_call.1} parent=1 // pred_fallthru
      _
    // Predicated region
    $region6: #{tpu_custom_call.1} parent=1 // pred_check
      _
    $region7: #{tpu_custom_call.1} parent=1 // pred_check_branch
      %19 = sbr.rel (0) target = $region9
    $region8: #{tpu_custom_call.1} parent=1 // pred_region
      _
    $region9: #{tpu_custom_call.1} parent=1 // pred_fallthru
      _
    // Predicated region
    $region10: #{tpu_custom_call.1} parent=1 // pred_check
      _
    $region11: #{tpu_custom_call.1} parent=1 // pred_check_branch
      %21 = sbr.rel (0) target = $region13
    $region12: #{tpu_custom_call.1} parent=1 // pred_region
      _
    $region13: #{tpu_custom_call.1} parent=1 // pred_fallthru
      _
    // Predicated region
    $region14: #{tpu_custom_call.1} parent=1 // pred_check
      _
    $region15: #{tpu_custom_call.1} parent=1 // pred_check_branch
      %23 = sbr.rel (0) target = $region17
    $region16: #{tpu_custom_call.1} parent=1 // pred_region
      _
    $region17: #{tpu_custom_call.1} parent=1 // pred_fallthru
      _
    // Predicated region
    $region18: #{tpu_custom_call.1} parent=1 // pred_check
      _
    $region19: #{tpu_custom_call.1} parent=1 // pred_check_branch
      %25 = sbr.rel (0) target = $region21
    $region20: #{tpu_custom_call.1} parent=1 // pred_region
      _
    $region21: #{tpu_custom_call.1} parent=1 // pred_fallthru
      _
    // Predicated region
    $region22: #{tpu_custom_call.1} parent=1 // pred_check
      _
    $region23: #{tpu_custom_call.1} parent=1 // pred_check_branch
      %27 = sbr.rel (0) target = $region25
    $region24: #{tpu_custom_call.1} parent=1 // pred_region
      _
    $region25: #{tpu_custom_call.1} parent=1 // pred_fallthru
      _
    %v28 = vld [vmem:[%s0] sm:$0xff]
    %v29 = vld [vmem:[%s1] sm:$0xff]
    %v30 = vld [vmem:[%s1 + $0x8] sm:$0xff]
    %v31 = vld [vmem:[%s1 + $0x10] sm:$0xff]
    %v32 = vld [vmem:[%s1 + $0x18] sm:$0x1]
    %v33 = vld [vmem:[%s2] sm:$0x1]
    %v35 = vlaneseq
    %v36 = vshrl.u32 %v35, 7
    %v37 = vsub.s32 0, %v36
    %v38 = vrot.slane %v33, %v37
    %vm40 = vcmask 203776
    %v42 = vsel %vm40, %v28, 0
    %vm44 = vcmask 1040384
    %v46 = vsel %vm44, %v32, 0
    %48 = vmatprep.subr.mxu0 0.0
    %49 = vmatpush1.msra.mxu0 0.0
    %50 = vmatprep.subr.mxu0 0.0
    %51 = vmatpush1.msra.mxu0 0.0
    %52 = vmatprep.subr.mxu0 0.0
    %53 = vmatpush1.msra.mxu0 0.0
    %54 = vmatprep.subr.mxu0 0.0
    %55 = vmatpush1.msra.mxu0 0.0
    %56 = vmatprep.subr.mxu0 0.0
    %57 = vmatpush1.msra.mxu0 0.0
    %58 = vmatprep.subr.mxu0 0.0
    %59 = vmatpush1.msra.mxu0 0.0
    %60 = vmatprep.subr.mxu0 0.0
    %61 = vmatpush1.msra.mxu0 0.0
    %62 = vmatprep.subr.mxu0 0.0
    %63 = vmatpush1.msra.mxu0 0.0
    %64 = vmatprep.subr.mxu0 0.0
    %65 = vmatpush1.msra.mxu0 0.0
    %66 = vmatprep.subr.mxu0 0.0
    %67 = vmatpush1.msra.mxu0 0.0
    %68 = vmatprep.subr.mxu0 0.0
    %69 = vmatpush1.msra.mxu0 0.0
    %70 = vmatprep.subr.mxu0 0.0
    %71 = vmatpush1.msra.mxu0 0.0
    %72 = vmatprep.subr.mxu0 0.0
    %73 = vmatpush1.msra.mxu0 %v46
    %74 = vmatprep.subr.mxu0 0.0
    %75 = vmatpush1.msra.mxu0 %v31
    %76 = vmatprep.subr.mxu0 0.0
    %77 = vmatpush1.msra.mxu0 %v30
    %78 = vmatprep.subr.mxu0 0.0
    %79 = vmatpush1.msra.mxu0 %v29
    %80 = vmatprep.subr.mxu0 0.0
    %81 = vmatpush2.msra.mxu0 0.0
    %82 = vmatprep.subr.mxu0 0.0
    %83 = vmatpush2.msra.mxu0 0.0
    %84 = vmatprep.subr.mxu0 0.0
    %85 = vmatpush2.msra.mxu0 0.0
    %86 = vmatprep.subr.mxu0 0.0
    %87 = vmatpush2.msra.mxu0 0.0
    %88 = vmatprep.subr.mxu0 0.0
    %89 = vmatpush2.msra.mxu0 0.0
    %90 = vmatprep.subr.mxu0 0.0
    %91 = vmatpush2.msra.mxu0 0.0
    %92 = vmatprep.subr.mxu0 0.0
    %93 = vmatpush2.msra.mxu0 0.0
    %94 = vmatprep.subr.mxu0 0.0
    %95 = vmatpush2.msra.mxu0 0.0
    %96 = vmatprep.subr.mxu0 0.0
    %97 = vmatpush2.msra.mxu0 0.0
    %98 = vmatprep.subr.mxu0 0.0
    %99 = vmatpush2.msra.mxu0 0.0
    %100 = vmatprep.subr.mxu0 0.0
    %101 = vmatpush2.msra.mxu0 0.0
    %102 = vmatprep.subr.mxu0 0.0
    %103 = vmatpush2.msra.mxu0 0.0
    %104 = vmatprep.subr.mxu0 0.0
    %105 = vmatpush2.msra.mxu0 0.0
    %106 = vmatprep.subr.mxu0 0.0
    %107 = vmatpush2.msra.mxu0 0.0
    %108 = vmatprep.subr.mxu0 0.0
    %109 = vmatpush2.msra.mxu0 0.0
    %110 = vmatprep.subr.mxu0 0.0
    %111 = vmatpush2.msra.mxu0 0.0
    %112 = vmatprep.mubr.f32.mxu0 0.0
    %113 = vmatmul.mubr.f32.gmra.mxu0 %v42
    %v114 = vpop.f32.mrf.mxu0
    %v115 = vadd.f32 %v38, %v114
    %v116 = vpop.f32.mrf.mxu0
    %117 = vdwg.mxu0
    %v118 = vld [vmem:[%s5] sm:$0xff]
    %v119 = vmul.f32 %v115, 0.5
    %v120 = vmul.f32 %v119, 1.442695
    %v121 = vpow.pop %v120
    %123 = vrot.lane.b32.xlu0 %v121, 118
    %v124 = vpop.permute.xlu0 %123
    %v126 = vmul.f32 %v118, %v124
    %v127 = vadd.f32 %v115, %v126
    %v128 = vld [vmem:[%s3] sm:$0xff]
    %v129 = vld [vmem:[%s3 + $0x8] sm:$0x3]
    %v130 = vld [vmem:[%s4] sm:$0x1]
    %v132 = vlaneseq
    %v133 = vshrl.u32 %v132, 7
    %v134 = vsub.s32 0, %v133
    %v135 = vrot.slane %v130, %v134
    %vm137 = vcmask 80896
    %v139 = vsel %vm137, %v127, 0
    %vm141 = vcmask 1041408
    %v143 = vsel %vm141, %v129, 0
    %145 = vmatprep.subr.mxu0 0.0
    %146 = vmatpush1.msra.mxu0 0.0
    %147 = vmatprep.subr.mxu0 0.0
    %148 = vmatpush1.msra.mxu0 0.0
    %149 = vmatprep.subr.mxu0 0.0
    %150 = vmatpush1.msra.mxu0 0.0
    %151 = vmatprep.subr.mxu0 0.0
    %152 = vmatpush1.msra.mxu0 0.0
    %153 = vmatprep.subr.mxu0 0.0
    %154 = vmatpush1.msra.mxu0 0.0
    %155 = vmatprep.subr.mxu0 0.0
    %156 = vmatpush1.msra.mxu0 0.0
    %157 = vmatprep.subr.mxu0 0.0
    %158 = vmatpush1.msra.mxu0 0.0
    %159 = vmatprep.subr.mxu0 0.0
    %160 = vmatpush1.msra.mxu0 0.0
    %161 = vmatprep.subr.mxu0 0.0
    %162 = vmatpush1.msra.mxu0 0.0
    %163 = vmatprep.subr.mxu0 0.0
    %164 = vmatpush1.msra.mxu0 0.0
    %165 = vmatprep.subr.mxu0 0.0
    %166 = vmatpush1.msra.mxu0 0.0
    %167 = vmatprep.subr.mxu0 0.0
    %168 = vmatpush1.msra.mxu0 0.0
    %169 = vmatprep.subr.mxu0 0.0
    %170 = vmatpush1.msra.mxu0 0.0
    %171 = vmatprep.subr.mxu0 0.0
    %172 = vmatpush1.msra.mxu0 0.0
    %173 = vmatprep.subr.mxu0 0.0
    %174 = vmatpush1.msra.mxu0 %v143
    %175 = vmatprep.subr.mxu0 0.0
    %176 = vmatpush1.msra.mxu0 %v128
    %177 = vmatprep.subr.mxu0 0.0
    %178 = vmatpush2.msra.mxu0 0.0
    %179 = vmatprep.subr.mxu0 0.0
    %180 = vmatpush2.msra.mxu0 0.0
    %181 = vmatprep.subr.mxu0 0.0
    %182 = vmatpush2.msra.mxu0 0.0
    %183 = vmatprep.subr.mxu0 0.0
    %184 = vmatpush2.msra.mxu0 0.0
    %185 = vmatprep.subr.mxu0 0.0
    %186 = vmatpush2.msra.mxu0 0.0
    %187 = vmatprep.subr.mxu0 0.0
    %188 = vmatpush2.msra.mxu0 0.0
    %189 = vmatprep.subr.mxu0 0.0
    %190 = vmatpush2.msra.mxu0 0.0
    %191 = vmatprep.subr.mxu0 0.0
    %192 = vmatpush2.msra.mxu0 0.0
    %193 = vmatprep.subr.mxu0 0.0
    %194 = vmatpush2.msra.mxu0 0.0
    %195 = vmatprep.subr.mxu0 0.0
    %196 = vmatpush2.msra.mxu0 0.0
    %197 = vmatprep.subr.mxu0 0.0
    %198 = vmatpush2.msra.mxu0 0.0
    %199 = vmatprep.subr.mxu0 0.0
    %200 = vmatpush2.msra.mxu0 0.0
    %201 = vmatprep.subr.mxu0 0.0
    %202 = vmatpush2.msra.mxu0 0.0
    %203 = vmatprep.subr.mxu0 0.0
    %204 = vmatpush2.msra.mxu0 0.0
    %205 = vmatprep.subr.mxu0 0.0
    %206 = vmatpush2.msra.mxu0 0.0
    %207 = vmatprep.subr.mxu0 0.0
    %208 = vmatpush2.msra.mxu0 0.0
    %209 = vmatprep.mubr.f32.mxu0 0.0
    %210 = vmatmul.mubr.f32.gmra.mxu0 %v139
    %v211 = vpop.f32.mrf.mxu0
    %v212 = vadd.f32 %v135, %v211
    %v213 = vpop.f32.mrf.mxu0
    %214 = vdwg.mxu0
    %215 = vst.msk [vmem:[#allocation2] sm:$0xff] %vm40, %v212
    %216 = vst.msk [vmem:[#allocation4] sm:$0xff] %vm137, %v115
    %218 = vrot.lane.b32.xlu0 %v115, 118
    %v219 = vpop.permute.xlu0 %218
    %221 = vst.msk [vmem:[#allocation6] sm:$0xff] %vm137, %v219
    // Predicated region
    $region26: #{tpu_custom_call.1} parent=1 // pred_check
      _
    $region27: #{tpu_custom_call.1} parent=1 // pred_check_branch
      %223 = sbr.rel (0) target = $region29
    $region28: #{tpu_custom_call.1} parent=1 // pred_region
      %s225 = ssub.s32 128, 128
      %226 = vsyncadd [#allocation3], %s225
      %s228 = sshll.u32 [#allocation2], 4
      %s229 = int_to_ptr.vmem [resolvable:$true] %s228
      %231 = dma.vmem_to_hbm [thread:$0]  %s229, 128, %s6, [#allocation3]
    $region29: #{tpu_custom_call.1} parent=1 // pred_fallthru
      _
    // Predicated region
    $region30: #{tpu_custom_call.1} parent=1 // pred_check
      _
    $region31: #{tpu_custom_call.1} parent=1 // pred_check_branch
      %233 = sbr.rel (0) target = $region33
    $region32: #{tpu_custom_call.1} parent=1 // pred_region
      %s235 = ssub.s32 128, 128
      %236 = vsyncadd [#allocation5], %s235
      %s238 = sshll.u32 [#allocation4], 4
      %s239 = int_to_ptr.vmem [resolvable:$true] %s238
      %241 = dma.vmem_to_hbm [thread:$0]  %s239, 128, %s7, [#allocation5]
    $region33: #{tpu_custom_call.1} parent=1 // pred_fallthru
      _
    // Predicated region
    $region34: #{tpu_custom_call.1} parent=1 // pred_check
      _
    $region35: #{tpu_custom_call.1} parent=1 // pred_check_branch
      %243 = sbr.rel (0) target = $region37
    $region36: #{tpu_custom_call.1} parent=1 // pred_region
      %s245 = ssub.s32 128, 128
      %246 = vsyncadd [#allocation5], %s245
      %s248 = sshll.u32 [#allocation6], 4
      %s249 = int_to_ptr.vmem [resolvable:$true] %s248
      %251 = dma.vmem_to_hbm [thread:$0]  %s249, 128, %s8, [#allocation5]
    $region37: #{tpu_custom_call.1} parent=1 // pred_fallthru
      _
    // Predicated region
    $region38: #{tpu_custom_call.1} parent=1 // pred_check
      _
    $region39: #{tpu_custom_call.1} parent=1 // pred_check_branch
      %253 = sbr.rel (0) target = $region41
    $region40: #{tpu_custom_call.1} parent=1 // pred_region
      %254 = dma.done [#allocation3], 128
    $region41: #{tpu_custom_call.1} parent=1 // pred_fallthru
      _
    // Predicated region
    $region42: #{tpu_custom_call.1} parent=1 // pred_check
      _
    $region43: #{tpu_custom_call.1} parent=1 // pred_check_branch
      %256 = sbr.rel (0) target = $region45
    $region44: #{tpu_custom_call.1} parent=1 // pred_region
      %257 = dma.done [#allocation5], 128
    $region45: #{tpu_custom_call.1} parent=1 // pred_fallthru
      _
    // Predicated region
    $region46: #{tpu_custom_call.1} parent=1 // pred_check
      _
    $region47: #{tpu_custom_call.1} parent=1 // pred_check_branch
      %259 = sbr.rel (0) target = $region49
    $region48: #{tpu_custom_call.1} parent=1 // pred_region
      %260 = dma.done [#allocation5], 128
    $region49: #{tpu_custom_call.1} parent=1 // pred_fallthru
      _
    %261 = vsyncpa [#allocation3], 1
    %262 = vsyncpa [#allocation5], 1

</llo_original>
